<compile_context>
chip_gen: v5e
topology: v5e:2x2
jax: 0.10.0
libtpu: 0.0.40
codegen_flags: <defaults>
</compile_context>

<pallas_src>
import functools

import numpy as np
import jax
import jax.numpy as jnp
from jax import lax
from jax.experimental import pallas as pl
from jax.experimental.pallas import tpu as pltpu


def _pad_to(v, m):
    return ((v + m - 1) // m) * m


# --------------------------------------------------------------------------- #
# Fused kernel: FPS -> kNN argmin -> one stacked MXU gather, per batch.        #
# --------------------------------------------------------------------------- #
def _generate_graph_kernel(xyz_ref, xyz_t_ref, x_ref, newxyz_ref, edge_ref,
                           oh_fps_scr, oh_knn_scr, *, npoint, neighbors):
    # xyz_ref:(1,N,3) f32 ; xyz_t_ref:(1,3,N) f32 ; x_ref:(1,N,C) bf16
    # newxyz_ref:(1,S,3) f32 ; edge_ref:(1,S,K*C) f32
    # oh_fps_scr:(S,N) f32 ; oh_knn_scr:(K*SP,N) f32  (SP = S padded to 8)
    N = xyz_ref.shape[1]
    C = x_ref.shape[2]
    S = npoint
    K = neighbors
    SP = _pad_to(S, 8)

    xyz_t = xyz_t_ref[0]                                      # (3, N)
    lane1 = lax.broadcasted_iota(jnp.int32, (1, N), 1)        # (1, N)
    lane_SN = lax.broadcasted_iota(jnp.int32, (S, N), 1)      # (S, N)

    # ||q||^2 per point, hoisted once; reused by FPS and the kNN distances.
    d2 = jnp.sum(xyz_t * xyz_t, axis=0, keepdims=True)        # (1, N)

    # Keep the stacked one-hot fully defined when S is not sublane-aligned.
    if S != SP:
        oh_knn_scr[...] = jnp.zeros((K * SP, N), jnp.float32)

    # ------------------- Phase 1: farthest point sampling ------------------ #
    def fps_body(i, carry):
        farthest, dist = carry
        # centroid = xyz[farthest]: dynamic sublane row load (no XLU reduce).
        centroid = xyz_ref[0, pl.ds(farthest, 1), :]          # (1, 3)
        # new_xyz row is exactly this centroid -> store now (no gather later).
        newxyz_ref[0, pl.ds(i, 1), :] = centroid
        # fps one-hot row, later folded into the edge matmul as "- new_points".
        oh_fps_scr[pl.ds(i, 1), :] = (lane1 == farthest).astype(jnp.float32)
        # squared distance to centroid: d2 - 2*c.q + ||c||^2.
        cross = jnp.dot(centroid, xyz_t,
                        preferred_element_type=jnp.float32)   # (1, N)
        c2 = jnp.sum(centroid * centroid)
        dist = jnp.minimum(dist, d2 - 2.0 * cross + c2)
        m = jnp.max(dist)
        # argmax (first occurrence), like torch.max(distance, -1)[1].
        new_far = jnp.min(jnp.where(dist == m, lane1, N)).astype(jnp.int32)
        return new_far, dist

    lax.fori_loop(0, S, fps_body,
                  (jnp.int32(0), jnp.full((1, N), 1e10, dtype=jnp.float32)))

    # ------------------ Phase 2: kNN selection (argmin only) --------------- #
    new_xyz = newxyz_ref[0]                                    # (S, 3)
    oh_fps = oh_fps_scr[...]                                   # (S, N)
    s2 = jnp.sum(new_xyz * new_xyz, axis=1, keepdims=True)     # (S, 1)
    cross = jnp.dot(new_xyz, xyz_t,
                    preferred_element_type=jnp.float32)        # (S, N)
    dist0 = d2 - 2.0 * cross + s2                              # (S, N)

    big = jnp.float32(3.0e38)

    def knn_body(k, dist):
        m = jnp.min(dist, axis=1, keepdims=True)                          # (S,1)
        idxk = jnp.min(jnp.where(dist == m, lane_SN, N),
                       axis=1, keepdims=True)                             # (S,1)
        eq = lane_SN == idxk                                              # (S,N)
        # (one_hot(knn_k) - one_hot(fps)) so the single stacked matmul in
        # phase 3 yields x[knn] - x[fps] (== edge) directly.
        base = pl.multiple_of(k * SP, 8)
        oh_knn_scr[pl.ds(base, S), :] = eq.astype(jnp.float32) - oh_fps
        return jnp.where(eq, big, dist)

    lax.fori_loop(0, K, knn_body, dist0)

    # ----------------- Phase 3: one stacked MXU gather matmul -------------- #
    oh = oh_knn_scr[...].astype(jnp.bfloat16)                  # (K*SP, N) {-1,0,1}
    x = x_ref[0]                                               # (N, C) bf16
    g = jnp.dot(oh, x, preferred_element_type=jnp.float32)     # (K*SP, C) f32

    # Scatter the k-major row blocks into a lane-dense (S, K*C) output tile;
    # the wrapper reshapes it to (S, K, C) for free (no HBM transpose pass).
    for k in range(K):
        edge_ref[0, :, k * C:(k + 1) * C] = g[k * SP:k * SP + S, :]


# --------------------------------------------------------------------------- #
# Wrapper (layout plumbing + pallas_call).                                     #
# --------------------------------------------------------------------------- #
@functools.partial(jax.jit, static_argnums=(2, 3))
def generate_graph(xyz, x, fps_points, neighbors):
    """Pallas implementation of GenerateGraph.forward(xyz, x)."""
    B, N, _ = xyz.shape
    C = x.shape[2]
    S, K = fps_points, neighbors
    SP = _pad_to(S, 8)

    xyz = xyz.astype(jnp.float32)
    xyz_t = jnp.transpose(xyz, (0, 2, 1))                      # (B, 3, N)
    x_bf = x.astype(jnp.bfloat16)   # one-hots are exact; distances stay f32

    # Rough padded VMEM budget: double-buffered blocks + scratch + temporaries.
    def blk(r, c, itemsize):
        return _pad_to(r, 8) * _pad_to(c, 128) * itemsize

    vmem_est = 2 * (blk(N, 3, 4) + blk(3, N, 4) + blk(N, C, 2)
                    + blk(S, 3, 4) + blk(S, K * C, 4))
    vmem_est += blk(S, N, 4) + blk(K * SP, N, 4)                    # scratches
    vmem_est += 3 * blk(S, N, 4) + blk(K * SP, N, 2) + blk(K * SP, C, 4)
    vmem_limit = int(min(max(vmem_est + (4 << 20), 32 << 20), 100 << 20))

    new_xyz, edge_flat = pl.pallas_call(
        functools.partial(_generate_graph_kernel, npoint=S, neighbors=K),
        out_shape=(
            jax.ShapeDtypeStruct((B, S, 3), jnp.float32),
            jax.ShapeDtypeStruct((B, S, K * C), jnp.float32),
        ),
        grid=(B,),
        in_specs=[
            pl.BlockSpec((1, N, 3), lambda b: (b, 0, 0)),
            pl.BlockSpec((1, 3, N), lambda b: (b, 0, 0)),
            pl.BlockSpec((1, N, C), lambda b: (b, 0, 0)),
        ],
        out_specs=(
            pl.BlockSpec((1, S, 3), lambda b: (b, 0, 0)),
            pl.BlockSpec((1, S, K * C), lambda b: (b, 0, 0)),
        ),
        scratch_shapes=[
            pltpu.VMEM((S, N), jnp.float32),          # fps one-hot
            pltpu.VMEM((K * SP, N), jnp.float32),     # stacked (knn - fps) one-hot
        ],
        compiler_params=pltpu.CompilerParams(
            dimension_semantics=("parallel",),        # batch axis -> megacore
            vmem_limit_bytes=vmem_limit,
        ),
    )(xyz, xyz_t, x_bf)

    edge = edge_flat.reshape(B, S, K, C)              # free contiguous view
    return new_xyz, edge


# --------------------------------------------------------------------------- #
# Pure-JAX reference (mirrors the PyTorch module) for a correctness check.     #
# --------------------------------------------------------------------------- #
def _reference_generate_graph(xyz, x, fps_points, neighbors):
    B, N, _ = xyz.shape

    def fps(pts):
        dist0 = jnp.full((B, N), 1e10, jnp.float32)
        far0 = jnp.zeros((B,), jnp.int32)
        idx0 = jnp.zeros((B, fps_points), jnp.int32)

        def body(i, carry):
            far, dist, idxs = carry
            idxs = idxs.at[:, i].set(far)
            centroid = pts[jnp.arange(B), far][:, None, :]          # (B,1,3)
            d = jnp.sum((pts - centroid) ** 2, axis=-1)
            dist = jnp.minimum(dist, d)
            far = jnp.argmax(dist, axis=-1).astype(jnp.int32)
            return far, dist, idxs

        _, _, idxs = lax.fori_loop(0, fps_points, body, (far0, dist0, idx0))
        return idxs

    fps_idx = fps(xyz)
    bidx = jnp.arange(B)[:, None]
    new_xyz = xyz[bidx, fps_idx]                                     # (B,S,3)
    new_points = x[bidx, fps_idx]                                    # (B,S,C)
    d = (-2.0 * jnp.einsum("bsc,bnc->bsn", new_xyz, xyz)
         + jnp.sum(new_xyz ** 2, -1)[..., None]
         + jnp.sum(xyz ** 2, -1)[:, None, :])                        # (B,S,N)
    _, knn = lax.top_k(-d, neighbors)                                # (B,S,K)
    grouped = x[jnp.arange(B)[:, None, None], knn]                   # (B,S,K,C)
    edge = grouped - new_points[:, :, None, :]
    return new_xyz, edge


if __name__ == "__main__":
    key = jax.random.PRNGKey(0)
    B, N, C = 2, 16, 8
    FPS_POINTS, NEIGHBORS = 4, 4
    k1, k2 = jax.random.split(key)
    xyz = jax.random.normal(k1, (B, N, 3), dtype=jnp.float32)
    x = jax.random.normal(k2, (B, N, C), dtype=jnp.float32)

    new_xyz, edge = generate_graph(xyz, x, FPS_POINTS, NEIGHBORS)
    jax.block_until_ready((new_xyz, edge))

    assert new_xyz.shape == (B, FPS_POINTS, 3)
    assert edge.shape == (B, FPS_POINTS, NEIGHBORS, C)

    ref_new_xyz, ref_edge = _reference_generate_graph(xyz, x, FPS_POINTS, NEIGHBORS)
    np.testing.assert_allclose(np.asarray(new_xyz), np.asarray(ref_new_xyz),
                               rtol=5e-2, atol=5e-2)
    np.testing.assert_allclose(np.asarray(edge), np.asarray(ref_edge),
                               rtol=5e-2, atol=5e-2)

    print("KERNEL_OK")
</pallas_src>

<mosaic_0001>
module attributes {stable_mosaic.version = 11 : i64} {
  func.func @_generate_graph_kernel(%arg0: i32, %arg1: memref<1x16x3xf32, #tpu.memory_space<vmem>>, %arg2: memref<1x3x16xf32, #tpu.memory_space<vmem>>, %arg3: memref<1x16x8xbf16, #tpu.memory_space<vmem>>, %arg4: memref<1x4x3xf32, #tpu.memory_space<vmem>>, %arg5: memref<1x4x32xf32, #tpu.memory_space<vmem>>, %arg6: memref<4x16xf32, #tpu.memory_space<vmem>>, %arg7: memref<32x16xf32, #tpu.memory_space<vmem>>) attributes {dimension_semantics = [#tpu.dimension_semantics<parallel>], iteration_bounds = array<i64: 2>, scalar_prefetch = 0 : i64, scratch_operands = 2 : i64, tpu.core_type = #tpu.core_type<tc>, window_params = [{transform_indices = @transform_0, window_bounds = array<i64: 1, 16, 3>}, {transform_indices = @transform_1, window_bounds = array<i64: 1, 3, 16>}, {transform_indices = @transform_2, window_bounds = array<i64: 1, 16, 8>}, {transform_indices = @transform_3, window_bounds = array<i64: 1, 4, 3>}, {transform_indices = @transform_4, window_bounds = array<i64: 1, 4, 32>}]} {
    %c0 = arith.constant 0 : index
    %c0_0 = arith.constant 0 : index
    %c0_1 = arith.constant 0 : index
    %0 = vector.load %arg2[%c0, %c0_0, %c0_1] : memref<1x3x16xf32, #tpu.memory_space<vmem>>, vector<1x3x16xf32>
    %1 = vector.shape_cast %0 : vector<1x3x16xf32> to vector<3x16xf32>
    %2 = tpu.iota {dimensions = array<i32: 1>} : vector<1x16xi32>
    %3 = tpu.iota {dimensions = array<i32: 1>} : vector<4x16xi32>
    %4 = arith.mulf %1, %1 : vector<3x16xf32>
    %cst = arith.constant dense<0.000000e+00> : vector<16xf32>
    %5 = vector.multi_reduction <add>, %4, %cst [0] : vector<3x16xf32> to vector<16xf32>
    %6 = vector.shape_cast %5 : vector<16xf32> to vector<1x16xf32>
    %cst_2 = arith.constant 0.000000e+00 : f32
    %7 = vector.broadcast %cst_2 : f32 to vector<32x16xf32>
    %c0_3 = arith.constant 0 : index
    %c0_4 = arith.constant 0 : index
    %8 = vector.load %arg7[%c0_3, %c0_4] : memref<32x16xf32, #tpu.memory_space<vmem>>, vector<32x16xf32>
    tpu.vector_store %arg7[%c0_3, %c0_4], %7 {strides = array<i32>} : memref<32x16xf32, #tpu.memory_space<vmem>>, vector<32x16xf32>,
    %cst_5 = arith.constant 1.000000e+10 : f32
    %9 = vector.broadcast %cst_5 : f32 to vector<1x16xf32>
    %c0_i32 = arith.constant 0 : i32
    %c0_i32_6 = arith.constant 0 : i32
    %c4_i32 = arith.constant 4 : i32
    %10 = arith.addi %c0_i32_6, %c4_i32 : i32
    %c1_i32 = arith.constant 1 : i32
    %11:2 = scf.for %arg8 = %c0_i32_6 to %10 step %c1_i32 iter_args(%arg9 = %c0_i32, %arg10 = %9) -> (i32, vector<1x16xf32>)  : i32 {
      %c0_36 = arith.constant 0 : index
      %48 = arith.index_cast %arg9 : i32 to index
      %c0_37 = arith.constant 0 : index
      %49 = vector.load %arg1[%c0_36, %48, %c0_37] : memref<1x16x3xf32, #tpu.memory_space<vmem>>, vector<1x1x3xf32>
      %50 = vector.shape_cast %49 : vector<1x1x3xf32> to vector<1x3xf32>
      %c0_38 = arith.constant 0 : index
      %51 = arith.index_cast %arg8 : i32 to index
      %c0_39 = arith.constant 0 : index
      %52 = vector.load %arg4[%c0_38, %51, %c0_39] : memref<1x4x3xf32, #tpu.memory_space<vmem>>, vector<1x1x3xf32>
      %53 = vector.shape_cast %52 : vector<1x1x3xf32> to vector<1x3xf32>
      %54 = vector.shape_cast %50 : vector<1x3xf32> to vector<1x1x3xf32>
      tpu.vector_store %arg4[%c0_38, %51, %c0_39], %54 {strides = array<i32>} : memref<1x4x3xf32, #tpu.memory_space<vmem>>, vector<1x1x3xf32>,
      %55 = vector.broadcast %arg9 : i32 to vector<1x16xi32>
      %56 = arith.cmpi eq, %2, %55 : vector<1x16xi32>
      %57 = arith.extui %56 : vector<1x16xi1> to vector<1x16xi32>
      %58 = arith.sitofp %57 : vector<1x16xi32> to vector<1x16xf32>
      %59 = arith.index_cast %arg8 : i32 to index
      %c0_40 = arith.constant 0 : index
      %60 = vector.load %arg6[%59, %c0_40] : memref<4x16xf32, #tpu.memory_space<vmem>>, vector<1x16xf32>
      tpu.vector_store %arg6[%59, %c0_40], %58 {strides = array<i32>} : memref<4x16xf32, #tpu.memory_space<vmem>>, vector<1x16xf32>,
      %cst_41 = arith.constant dense<0.000000e+00> : vector<1x16xf32>
      %61 = tpu.matmul %50, %1, %cst_41 {dimension_numbers = #tpu.dot_dimension_numbers<[1], [0], [0], [1], [0, 0, 1, 1], [], []>} : vector<1x3xf32>, vector<3x16xf32>, vector<1x16xf32> -> vector<1x16xf32>
      %62 = arith.mulf %50, %50 : vector<1x3xf32>
      %63 = vector.shape_cast %62 : vector<1x3xf32> to vector<1x1x3xf32>
      %cst_42 = arith.constant dense<0.000000e+00> : vector<1xf32>
      %64 = vector.multi_reduction <add>, %63, %cst_42 [1, 2] : vector<1x1x3xf32> to vector<1xf32>
      %65 = vector.shape_cast %64 : vector<1xf32> to vector<1x1x1xf32>
      %66 = vector.extract %65[0, 0, 0] : f32 from vector<1x1x1xf32>
      %cst_43 = arith.constant 2.000000e+00 : f32
      %67 = vector.broadcast %cst_43 : f32 to vector<1x16xf32>
      %68 = arith.mulf %67, %61 : vector<1x16xf32>
      %69 = arith.subf %6, %68 : vector<1x16xf32>
      %70 = vector.broadcast %66 : f32 to vector<1x16xf32>
      %71 = arith.addf %69, %70 : vector<1x16xf32>
      %72 = arith.minimumf %arg10, %71 : vector<1x16xf32>
      %73 = vector.shape_cast %72 : vector<1x16xf32> to vector<1x1x16xf32>
      %cst_44 = arith.constant dense<0xFF800000> : vector<1xf32>
      %74 = vector.multi_reduction <maximumf>, %73, %cst_44 [1, 2] : vector<1x1x16xf32> to vector<1xf32>
      %75 = vector.shape_cast %74 : vector<1xf32> to vector<1x1x1xf32>
      %76 = vector.extract %75[0, 0, 0] : f32 from vector<1x1x1xf32>
      %77 = vector.broadcast %76 : f32 to vector<1x16xf32>
      %78 = arith.cmpf oeq, %72, %77 : vector<1x16xf32>
      %c16_i32 = arith.constant 16 : i32
      %79 = vector.broadcast %c16_i32 : i32 to vector<1x16xi32>
      %80 = arith.select %78, %2, %79 : vector<1x16xi1>, vector<1x16xi32>
      %81 = vector.shape_cast %80 : vector<1x16xi32> to vector<1x1x16xi32>
      %cst_45 = arith.constant dense<2147483647> : vector<1xi32>
      %82 = vector.multi_reduction <minsi>, %81, %cst_45 [1, 2] : vector<1x1x16xi32> to vector<1xi32>
      %83 = vector.shape_cast %82 : vector<1xi32> to vector<1x1x1xi32>
      %84 = vector.extract %83[0, 0, 0] : i32 from vector<1x1x1xi32>
      scf.yield %84, %72 : i32, vector<1x16xf32>
    }
    %c4_i32_7 = arith.constant 4 : i32
    %c0_8 = arith.constant 0 : index
    %c0_9 = arith.constant 0 : index
    %c0_10 = arith.constant 0 : index
    %12 = vector.load %arg4[%c0_8, %c0_9, %c0_10] : memref<1x4x3xf32, #tpu.memory_space<vmem>>, vector<1x4x3xf32>
    %13 = vector.shape_cast %12 : vector<1x4x3xf32> to vector<4x3xf32>
    %c0_11 = arith.constant 0 : index
    %c0_12 = arith.constant 0 : index
    %14 = vector.load %arg6[%c0_11, %c0_12] : memref<4x16xf32, #tpu.memory_space<vmem>>, vector<4x16xf32>
    %15 = arith.mulf %13, %13 : vector<4x3xf32>
    %cst_13 = arith.constant dense<0.000000e+00> : vector<4xf32>
    %16 = vector.multi_reduction <add>, %15, %cst_13 [1] : vector<4x3xf32> to vector<4xf32>
    %17 = vector.shape_cast %16 : vector<4xf32> to vector<4x1xf32>
    %cst_14 = arith.constant dense<0.000000e+00> : vector<4x16xf32>
    %18 = tpu.matmul %13, %1, %cst_14 {dimension_numbers = #tpu.dot_dimension_numbers<[1], [0], [0], [1], [0, 0, 1, 1], [], []>} : vector<4x3xf32>, vector<3x16xf32>, vector<4x16xf32> -> vector<4x16xf32>
    %cst_15 = arith.constant 2.000000e+00 : f32
    %19 = vector.broadcast %cst_15 : f32 to vector<4x16xf32>
    %20 = arith.mulf %19, %18 : vector<4x16xf32>
    %21 = vector.broadcast %6 : vector<1x16xf32> to vector<4x16xf32>
    %22 = arith.subf %21, %20 : vector<4x16xf32>
    %23 = vector.broadcast %17 : vector<4x1xf32> to vector<4x16xf32>
    %24 = arith.addf %22, %23 : vector<4x16xf32>
    %cst_16 = arith.constant 3.000000e+38 : f32
    %c0_i32_17 = arith.constant 0 : i32
    %c4_i32_18 = arith.constant 4 : i32
    %25 = arith.addi %c0_i32_17, %c4_i32_18 : i32
    %c1_i32_19 = arith.constant 1 : i32
    %26 = scf.for %arg8 = %c0_i32_17 to %25 step %c1_i32_19 iter_args(%arg9 = %24) -> (vector<4x16xf32>)  : i32 {
      %cst_36 = arith.constant dense<0x7F800000> : vector<4xf32>
      %48 = vector.multi_reduction <minimumf>, %arg9, %cst_36 [1] : vector<4x16xf32> to vector<4xf32>
      %49 = vector.shape_cast %48 : vector<4xf32> to vector<4x1xf32>
      %50 = vector.broadcast %49 : vector<4x1xf32> to vector<4x16xf32>
      %51 = arith.cmpf oeq, %arg9, %50 : vector<4x16xf32>
      %c16_i32 = arith.constant 16 : i32
      %52 = vector.broadcast %c16_i32 : i32 to vector<4x16xi32>
      %53 = arith.select %51, %3, %52 : vector<4x16xi1>, vector<4x16xi32>
      %cst_37 = arith.constant dense<2147483647> : vector<4xi32>
      %54 = vector.multi_reduction <minsi>, %53, %cst_37 [1] : vector<4x16xi32> to vector<4xi32>
      %55 = vector.shape_cast %54 : vector<4xi32> to vector<4x1xi32>
      %56 = vector.broadcast %55 : vector<4x1xi32> to vector<4x16xi32>
      %57 = arith.cmpi eq, %3, %56 : vector<4x16xi32>
      %c8_i32 = arith.constant 8 : i32
      %58 = arith.muli %arg8, %c8_i32 : i32
      %59 = tpu.assume_multiple %58, 8 : i32
      %60 = arith.extui %57 : vector<4x16xi1> to vector<4x16xi32>
      %61 = arith.sitofp %60 : vector<4x16xi32> to vector<4x16xf32>
      %62 = arith.subf %61, %14 : vector<4x16xf32>
      %63 = arith.index_cast %59 : i32 to index
      %c0_38 = arith.constant 0 : index
      %64 = vector.load %arg7[%63, %c0_38] : memref<32x16xf32, #tpu.memory_space<vmem>>, vector<4x16xf32>
      tpu.vector_store %arg7[%63, %c0_38], %62 {strides = array<i32>} : memref<32x16xf32, #tpu.memory_space<vmem>>, vector<4x16xf32>,
      %65 = vector.broadcast %cst_16 : f32 to vector<4x16xf32>
      %66 = arith.select %57, %65, %arg9 : vector<4x16xi1>, vector<4x16xf32>
      scf.yield %66 : vector<4x16xf32>
    }
    %c4_i32_20 = arith.constant 4 : i32
    %c0_21 = arith.constant 0 : index
    %c0_22 = arith.constant 0 : index
    %27 = vector.load %arg7[%c0_21, %c0_22] : memref<32x16xf32, #tpu.memory_space<vmem>>, vector<32x16xf32>
    %28 = arith.truncf %27 : vector<32x16xf32> to vector<32x16xbf16>
    %c0_23 = arith.constant 0 : index
    %c0_24 = arith.constant 0 : index
    %c0_25 = arith.constant 0 : index
    %29 = vector.load %arg3[%c0_23, %c0_24, %c0_25] : memref<1x16x8xbf16, #tpu.memory_space<vmem>>, vector<1x16x8xbf16>
    %30 = vector.shape_cast %29 : vector<1x16x8xbf16> to vector<16x8xbf16>
    %cst_26 = arith.constant dense<0.000000e+00> : vector<32x8xf32>
    %31 = tpu.matmul %28, %30, %cst_26 {dimension_numbers = #tpu.dot_dimension_numbers<[1], [0], [0], [1], [0, 0, 1, 1], [], []>} : vector<32x16xbf16>, vector<16x8xbf16>, vector<32x8xf32> -> vector<32x8xf32>
    %32 = vector.extract_strided_slice %31 {offsets = [0, 0], sizes = [4, 8], strides = [1, 1]} : vector<32x8xf32> to vector<4x8xf32>
    %c0_27 = arith.constant 0 : index
    %c0_28 = arith.constant 0 : index
    %c0_29 = arith.constant 0 : index
    %33 = vector.load %arg5[%c0_27, %c0_28, %c0_29] : memref<1x4x32xf32, #tpu.memory_space<vmem>>, vector<1x4x8xf32>
    %34 = vector.shape_cast %33 : vector<1x4x8xf32> to vector<4x8xf32>
    %35 = vector.shape_cast %32 : vector<4x8xf32> to vector<1x4x8xf32>
    tpu.vector_store %arg5[%c0_27, %c0_28, %c0_29], %35 {strides = array<i32>} : memref<1x4x32xf32, #tpu.memory_space<vmem>>, vector<1x4x8xf32>,
    %36 = vector.extract_strided_slice %31 {offsets = [8, 0], sizes = [4, 8], strides = [1, 1]} : vector<32x8xf32> to vector<4x8xf32>
    %c0_30 = arith.constant 0 : index
    %c0_31 = arith.constant 0 : index
    %c8 = arith.constant 8 : index
    %37 = vector.load %arg5[%c0_30, %c0_31, %c8] : memref<1x4x32xf32, #tpu.memory_space<vmem>>, vector<1x4x8xf32>
    %38 = vector.shape_cast %37 : vector<1x4x8xf32> to vector<4x8xf32>
    %39 = vector.shape_cast %36 : vector<4x8xf32> to vector<1x4x8xf32>
    tpu.vector_store %arg5[%c0_30, %c0_31, %c8], %39 {strides = array<i32>} : memref<1x4x32xf32, #tpu.memory_space<vmem>>, vector<1x4x8xf32>,
    %40 = vector.extract_strided_slice %31 {offsets = [16, 0], sizes = [4, 8], strides = [1, 1]} : vector<32x8xf32> to vector<4x8xf32>
    %c0_32 = arith.constant 0 : index
    %c0_33 = arith.constant 0 : index
    %c16 = arith.constant 16 : index
    %41 = vector.load %arg5[%c0_32, %c0_33, %c16] : memref<1x4x32xf32, #tpu.memory_space<vmem>>, vector<1x4x8xf32>
    %42 = vector.shape_cast %41 : vector<1x4x8xf32> to vector<4x8xf32>
    %43 = vector.shape_cast %40 : vector<4x8xf32> to vector<1x4x8xf32>
    tpu.vector_store %arg5[%c0_32, %c0_33, %c16], %43 {strides = array<i32>} : memref<1x4x32xf32, #tpu.memory_space<vmem>>, vector<1x4x8xf32>,
    %44 = vector.extract_strided_slice %31 {offsets = [24, 0], sizes = [4, 8], strides = [1, 1]} : vector<32x8xf32> to vector<4x8xf32>
    %c0_34 = arith.constant 0 : index
    %c0_35 = arith.constant 0 : index
    %c24 = arith.constant 24 : index
    %45 = vector.load %arg5[%c0_34, %c0_35, %c24] : memref<1x4x32xf32, #tpu.memory_space<vmem>>, vector<1x4x8xf32>
    %46 = vector.shape_cast %45 : vector<1x4x8xf32> to vector<4x8xf32>
    %47 = vector.shape_cast %44 : vector<4x8xf32> to vector<1x4x8xf32>
    tpu.vector_store %arg5[%c0_34, %c0_35, %c24], %47 {strides = array<i32>} : memref<1x4x32xf32, #tpu.memory_space<vmem>>, vector<1x4x8xf32>,
    return
  }
  func.func @transform_0(%arg0: i32) -> (i32, i32, i32) {
    %c0_i32 = arith.constant 0 : i32
    %c0_i32_0 = arith.constant 0 : i32
    %c0_i32_1 = arith.constant 0 : i32
    return %arg0, %c0_i32, %c0_i32_0 : i32, i32, i32
  }
  func.func @transform_1(%arg0: i32) -> (i32, i32, i32) {
    %c0_i32 = arith.constant 0 : i32
    %c0_i32_0 = arith.constant 0 : i32
    %c0_i32_1 = arith.constant 0 : i32
    return %arg0, %c0_i32, %c0_i32_0 : i32, i32, i32
  }
  func.func @transform_2(%arg0: i32) -> (i32, i32, i32) {
    %c0_i32 = arith.constant 0 : i32
    %c0_i32_0 = arith.constant 0 : i32
    %c0_i32_1 = arith.constant 0 : i32
    return %arg0, %c0_i32, %c0_i32_0 : i32, i32, i32
  }
  func.func @transform_3(%arg0: i32) -> (i32, i32, i32) {
    %c0_i32 = arith.constant 0 : i32
    %c0_i32_0 = arith.constant 0 : i32
    %c0_i32_1 = arith.constant 0 : i32
    return %arg0, %c0_i32, %c0_i32_0 : i32, i32, i32
  }
  func.func @transform_4(%arg0: i32) -> (i32, i32, i32) {
    %c0_i32 = arith.constant 0 : i32
    %c0_i32_0 = arith.constant 0 : i32
    %c0_i32_1 = arith.constant 0 : i32
    return %arg0, %c0_i32, %c0_i32_0 : i32, i32, i32
  }
}

</mosaic_0001>

<llo_original>
// kernel: generate_graph.1
$region0: #{generate_graph.1}
  #allocation0 [shape = 'u32[]', space=smem, size = 0x4, offset = 0x4, fixed_abs, tag = 'smem constant byte address 0x4 - core index']
  #allocation1 [shape = 'u32[72,128]{1,0:T(1,128)}', space=vmem, size = 0x9000, scoped, tag = 'internal scratch']
  #allocation2 [shape = 'f32[4,16]{1,0:T(4,128)}', space=vmem, size = 0x800, scoped, tag = 'scratch operand']
  #allocation3 [shape = 'f32[32,16]{1,0:T(8,128)}', space=vmem, size = 0x4000, scoped, tag = 'scratch operand']
  %s0 = inlined_call_operand.vmem [shape: f32[2,16,3], index: 0, kind: input, shape index: {}]
  %s1 = inlined_call_operand.vmem [shape: f32[2,3,16], index: 1, kind: input, shape index: {}]
  %s2 = inlined_call_operand.vmem [shape: bf16[2,16,8], index: 2, kind: input, shape index: {}]
  %s3 = inlined_call_operand.vmem [shape: f32[2,4,3], index: 3, kind: output, shape index: {0}]
  %s4 = inlined_call_operand.vmem [shape: f32[2,4,32], index: 4, kind: output, shape index: {1}]
  %5 = xla_tuple %s3, %s4
  %s6 = sld [smem:[#allocation0]]
  $region67: #{generate_graph.1} parent=0
    _
  %s8 = ssub.s32 1, %s6
  %s9 = scalar_select 0, %s8, %s6
  loop: start=0, step=1, limit=4
  $region2: #{generate_graph.1} parent=0 // loop_pre_header
    _
  $region3: #{generate_graph.1} parent=0 // loop_header
    %s11 = sphi 0, %s15
    %p12 = scmp.ge.s32.totalorder %s11, 4
    %s21 = sphi 0, %s23
    %s24 = sphi 0, %s21
    %s25 = sphi 0, %s24
    %s41 = sphi 0, %s25
    %s47 = sphi 0, %s49
    %s50 = sphi 0, %s47
    %s51 = sphi 0, %s50
    %s67 = sphi 0, %s51
    %s73 = sphi 0, %s75
    %s76 = sphi 0, %s73
    %s77 = sphi 0, %s76
    %s93 = sphi 0, %s77
    %s99 = sphi 0, %s101
    %s102 = sphi 0, %s99
    %s103 = sphi 0, %s102
    %s119 = sphi 0, %s103
    %s125 = sphi 0, %s127
    %s128 = sphi 0, %s125
    %s129 = sphi 0, %s128
    %s145 = sphi 0, %s129
  $region4: #{generate_graph.1} parent=0 // loop_header_branch
    %14 = sbr.rel (%p12) target = $region8
  $region5: #{generate_graph.1} parent=0 // loop_body
    %s16 = ssub.s32 %s11, 1
    %s17 = ssub.s32 %s11, 2
    %s18 = sadd.s32 %s11, 1
    %s19 = ssub.s32 %s11, %s18
    %p20 = scmp.eq.s32.totalorder %s19, 0
    %s22 = sadd.s32 %s21, 1
    %s23 = scalar_select %p20, %s21, %s22
    %p26 = pneg %p20
    %p27 = scmp.eq.s32.totalorder %s11, 1
    %p28 = por %p26, %p27
    %p29 = scmp.ne.s32.totalorder %s21, %s24
    %p30 = scmp.eq.s32.totalorder %s11, 0
    %p31 = por %p29, %p30
    %p32 = scmp.ne.s32.totalorder %s21, %s24
    %p33 = scmp.eq.s32.totalorder %s16, 1
    %p34 = por %p32, %p33
    %p35 = scmp.ne.s32.totalorder %s24, %s25
    %p36 = scmp.eq.s32.totalorder %s16, 0
    %p37 = por %p35, %p36
    %p38 = scmp.ne.s32.totalorder %s24, %s25
    %p39 = scmp.eq.s32.totalorder %s17, 1
    %p40 = por %p38, %p39
    %p42 = scmp.ne.s32.totalorder %s25, %s41
    %p43 = scmp.eq.s32.totalorder %s17, 0
    %p44 = por %p42, %p43
    %s45 = ssub.s32 %s11, %s18
    %p46 = scmp.eq.s32.totalorder %s45, 0
    %s48 = sadd.s32 %s47, 1
    %s49 = scalar_select %p46, %s47, %s48
    %p52 = pneg %p46
    %p53 = scmp.eq.s32.totalorder %s11, 1
    %p54 = por %p52, %p53
    %p55 = scmp.ne.s32.totalorder %s47, %s50
    %p56 = scmp.eq.s32.totalorder %s11, 0
    %p57 = por %p55, %p56
    %p58 = scmp.ne.s32.totalorder %s47, %s50
    %p59 = scmp.eq.s32.totalorder %s16, 1
    %p60 = por %p58, %p59
    %p61 = scmp.ne.s32.totalorder %s50, %s51
    %p62 = scmp.eq.s32.totalorder %s16, 0
    %p63 = por %p61, %p62
    %p64 = scmp.ne.s32.totalorder %s50, %s51
    %p65 = scmp.eq.s32.totalorder %s17, 1
    %p66 = por %p64, %p65
    %p68 = scmp.ne.s32.totalorder %s51, %s67
    %p69 = scmp.eq.s32.totalorder %s17, 0
    %p70 = por %p68, %p69
    %s71 = ssub.s32 %s11, %s18
    %p72 = scmp.eq.s32.totalorder %s71, 0
    %s74 = sadd.s32 %s73, 1
    %s75 = scalar_select %p72, %s73, %s74
    %p78 = pneg %p72
    %p79 = scmp.eq.s32.totalorder %s11, 1
    %p80 = por %p78, %p79
    %p81 = scmp.ne.s32.totalorder %s73, %s76
    %p82 = scmp.eq.s32.totalorder %s11, 0
    %p83 = por %p81, %p82
    %p84 = scmp.ne.s32.totalorder %s73, %s76
    %p85 = scmp.eq.s32.totalorder %s16, 1
    %p86 = por %p84, %p85
    %p87 = scmp.ne.s32.totalorder %s76, %s77
    %p88 = scmp.eq.s32.totalorder %s16, 0
    %p89 = por %p87, %p88
    %p90 = scmp.ne.s32.totalorder %s76, %s77
    %p91 = scmp.eq.s32.totalorder %s17, 1
    %p92 = por %p90, %p91
    %p94 = scmp.ne.s32.totalorder %s77, %s93
    %p95 = scmp.eq.s32.totalorder %s17, 0
    %p96 = por %p94, %p95
    %s97 = ssub.s32 %s11, %s18
    %p98 = scmp.eq.s32.totalorder %s97, 0
    %s100 = sadd.s32 %s99, 1
    %s101 = scalar_select %p98, %s99, %s100
    %p104 = pneg %p98
    %p105 = scmp.eq.s32.totalorder %s11, 1
    %p106 = por %p104, %p105
    %p107 = scmp.ne.s32.totalorder %s99, %s102
    %p108 = scmp.eq.s32.totalorder %s11, 0
    %p109 = por %p107, %p108
    %p110 = scmp.ne.s32.totalorder %s99, %s102
    %p111 = scmp.eq.s32.totalorder %s16, 1
    %p112 = por %p110, %p111
    %p113 = scmp.ne.s32.totalorder %s102, %s103
    %p114 = scmp.eq.s32.totalorder %s16, 0
    %p115 = por %p113, %p114
    %p116 = scmp.ne.s32.totalorder %s102, %s103
    %p117 = scmp.eq.s32.totalorder %s17, 1
    %p118 = por %p116, %p117
    %p120 = scmp.ne.s32.totalorder %s103, %s119
    %p121 = scmp.eq.s32.totalorder %s17, 0
    %p122 = por %p120, %p121
    %s123 = ssub.s32 %s11, %s18
    %p124 = scmp.eq.s32.totalorder %s123, 0
    %s126 = sadd.s32 %s125, 1
    %s127 = scalar_select %p124, %s125, %s126
    %p130 = pneg %p124
    %p131 = scmp.eq.s32.totalorder %s11, 1
    %p132 = por %p130, %p131
    %p133 = scmp.ne.s32.totalorder %s125, %s128
    %p134 = scmp.eq.s32.totalorder %s11, 0
    %p135 = por %p133, %p134
    %p136 = scmp.ne.s32.totalorder %s125, %s128
    %p137 = scmp.eq.s32.totalorder %s16, 1
    %p138 = por %p136, %p137
    %p139 = scmp.ne.s32.totalorder %s128, %s129
    %p140 = scmp.eq.s32.totalorder %s16, 0
    %p141 = por %p139, %p140
    %p142 = scmp.ne.s32.totalorder %s128, %s129
    %p143 = scmp.eq.s32.totalorder %s17, 1
    %p144 = por %p142, %p143
    %p146 = scmp.ne.s32.totalorder %s129, %s145
    %p147 = scmp.eq.s32.totalorder %s17, 0
    %p148 = por %p146, %p147
    %p149 = scmp.le.s32.totalorder 1, %s11
    %p150 = scmp.lt.s32.totalorder %s11, 3
    %p151 = pnand %p149, %p150
    %p152 = pneg %p151
    // Predicated region
    $region9: #{generate_graph.1} parent=5 // pred_check
      _
    $region10: #{generate_graph.1} parent=5 // pred_check_branch
      %154 = sbr.rel (%p151) target = $region12
    $region11: #{generate_graph.1} parent=5 // pred_region
      %s155 = ssub.s32 %s11, 1
    $region12: #{generate_graph.1} parent=5 // pred_fallthru
      _
    %p156 = scmp.lt.s32.totalorder %s11, 2
    // Predicated region
    $region13: #{generate_graph.1} parent=5 // pred_check
      %p157 = pneg %p156
    $region14: #{generate_graph.1} parent=5 // pred_check_branch
      %159 = sbr.rel (%p157) target = $region16
    $region15: #{generate_graph.1} parent=5 // pred_region
      // Predicated region
      $region17: #{generate_graph.1} parent=15 // pred_check
        %p160 = pneg %p31
      $region18: #{generate_graph.1} parent=15 // pred_check_branch
        %162 = sbr.rel (%p160) target = $region20
      $region19: #{generate_graph.1} parent=15 // pred_region
        %p163 = scmp.lt.s32.totalorder %s11, 1
        %s164 = scalar_select %p163, %s11, 1
        %s165 = smul.addr %s164, 2
        %s166 = smul.addr %s165, 8
        %s167 = scalar_lea.vmem %s0, %s166
      $region20: #{generate_graph.1} parent=15 // pred_fallthru
        _
      // Predicated region
      $region21: #{generate_graph.1} parent=15 // pred_check
        %p168 = pneg %p57
      $region22: #{generate_graph.1} parent=15 // pred_check_branch
        %170 = sbr.rel (%p168) target = $region24
      $region23: #{generate_graph.1} parent=15 // pred_region
        %p171 = scmp.lt.s32.totalorder %s11, 1
        %s172 = scalar_select %p171, %s11, 1
        %s173 = smul.addr %s172, 4
        %s174 = scalar_lea.vmem %s1, %s173
      $region24: #{generate_graph.1} parent=15 // pred_fallthru
        _
      // Predicated region
      $region25: #{generate_graph.1} parent=15 // pred_check
        %p175 = pneg %p83
      $region26: #{generate_graph.1} parent=15 // pred_check_branch
        %177 = sbr.rel (%p175) target = $region28
      $region27: #{generate_graph.1} parent=15 // pred_region
        %p178 = scmp.lt.s32.totalorder %s11, 1
        %s179 = scalar_select %p178, %s11, 1
        %s180 = smul.addr %s179, 2
        %s181 = smul.addr %s180, 4
        %s182 = scalar_lea.vmem %s2, %s181
      $region28: #{generate_graph.1} parent=15 // pred_fallthru
        _
    $region16: #{generate_graph.1} parent=5 // pred_fallthru
      _
    %p183 = scmp.le.s32.totalorder 1, %s11
    %p184 = scmp.lt.s32.totalorder %s11, 3
    %p185 = pnand %p183, %p184
    %p186 = pneg %p185
    // Predicated region
    $region29: #{generate_graph.1} parent=5 // pred_check
      _
    $region30: #{generate_graph.1} parent=5 // pred_check_branch
      %188 = sbr.rel (%p185) target = $region32
    $region31: #{generate_graph.1} parent=5 // pred_region
      %s189 = ssub.s32 %s11, 1
      %p190 = scmp.lt.s32.totalorder %s16, 1
      %s191 = scalar_select %p190, %s16, 1
      %s192 = smul.addr %s191, 2
      %s193 = smul.addr %s192, 8
      %s194 = scalar_lea.vmem %s0, %s193
      %p195 = pneg %p37
      %p196 = pneg %p34
      %p197 = scmp.lt.s32.totalorder %s16, 1
      %s198 = scalar_select %p197, %s16, 1
      %s199 = smul.addr %s198, 4
      %s200 = scalar_lea.vmem %s1, %s199
      %p201 = pneg %p63
      %p202 = pneg %p60
      %p203 = scmp.lt.s32.totalorder %s16, 1
      %s204 = scalar_select %p203, %s16, 1
      %s205 = smul.addr %s204, 2
      %s206 = smul.addr %s205, 4
      %s207 = scalar_lea.vmem %s2, %s206
      %p208 = pneg %p89
      %p209 = pneg %p86
      %p210 = pneg %p115
      %p211 = pneg %p112
      %p212 = scmp.lt.s32.totalorder %s16, 1
      %s213 = scalar_select %p212, %s16, 1
      %s214 = smul.addr %s213, 4
      %s215 = scalar_lea.vmem %s3, %s214
      %p216 = pneg %p141
      %p217 = pneg %p138
      %p218 = scmp.lt.s32.totalorder %s16, 1
      %s219 = scalar_select %p218, %s16, 1
      %s220 = smul.addr %s219, 4
      %s221 = scalar_lea.vmem %s4, %s220
      %p222 = scmp.lt.s32.totalorder %s16, 1
      %s223 = scalar_select %p222, %s16, 1
      %s224 = smul.addr %s223, 2
      %s225 = smul.addr %s224, 8
      %s226 = scalar_lea.vmem %s0, %s225
      %p227 = scmp.lt.s32.totalorder %s16, 1
      %s228 = scalar_select %p227, %s16, 1
      %s229 = smul.addr %s228, 4
      %s230 = scalar_lea.vmem %s1, %s229
      %p231 = scmp.lt.s32.totalorder %s16, 1
      %s232 = scalar_select %p231, %s16, 1
      %s233 = smul.addr %s232, 2
      %s234 = smul.addr %s233, 4
      %s235 = scalar_lea.vmem %s2, %s234
      %p236 = scmp.lt.s32.totalorder %s16, 1
      %s237 = scalar_select %p236, %s16, 1
      %s238 = smul.addr %s237, 4
      %s239 = scalar_lea.vmem %s3, %s238
      %p240 = scmp.lt.s32.totalorder %s16, 1
      %s241 = scalar_select %p240, %s16, 1
      %s242 = smul.addr %s241, 4
      %s243 = scalar_lea.vmem %s4, %s242
      %v245 = vld [vmem:[%s230] sm:$0x7]
      %v246 = vlaneseq
      %v247 = vand.u32 %v246, 127
      %v248 = vmul.f32 %v245, %v245
      %vm249 = vcmask 124928
      %v250 = vsel %vm249, %v248, 0.0
      %v251 = vrot.slane %v250, 4
      %v252 = vadd.f32 %v250, %v251
      %v253 = vrot.slane %v252, 2
      %v254 = vadd.f32 %v252, %v253
      %v255 = vrot.slane %v254, 1
      %v256 = vadd.f32 %v254, %v255
      %vm257 = vcmask 130048
      %258 = vst.msk [vmem:[#allocation3] sm:$0xff] %vm257, 0.0
      %259 = vst.msk [vmem:[#allocation3 + $0x8] sm:$0xff] %vm257, 0.0
      %260 = vst.msk [vmem:[#allocation3 + $0x10] sm:$0xff] %vm257, 0.0
      %261 = vst.msk [vmem:[#allocation3 + $0x18] sm:$0xff] %vm257, 0.0
      loop: start=0, step=1, limit=4
      $region33: #{generate_graph.1} parent=31 // loop_pre_header
        _
      $region34: #{generate_graph.1} parent=31 // loop_header
        %s263 = sphi 0, %s267
        %p264 = scmp.ge.s32.totalorder %s263, 4
        %s268 = sphi 0, %s363
        %v269 = vphi 1e+10, %v325
      $region35: #{generate_graph.1} parent=31 // loop_header_branch
        %266 = sbr.rel (%p264) target = $region39
      $region36: #{generate_graph.1} parent=31 // loop_body
        %s270 = scalar_lea.vmem %s226, %s268
        %v271 = vld [vmem:[%s270] sm:$0x1]
        %s272 = scalar_lea.vmem %s239, %s263
        %vm273 = vcmask 16384
        %274 = vst.msk [vmem:[%s272] sm:$0x1] %vm273, %v271
        %v275 = vstv %s268
        %vm276 = vcmp.eq.s32.totalorder %v247, %v275
        %v277 = vsel %vm276, 1, 0
        %v278 = vcvt.s32.f32 %v277
        %s279 = scalar_lea.vmem [#allocation2], %s263
        %vm280 = vcmask 122880
        %281 = vst.msk [vmem:[%s279] sm:$0x1] %vm280, %v278
        %vm282 = vcmask 23552
        %v284 = vsel %vm282, %v271, 0
        %vm286 = vcmask 1042432
        %v288 = vsel %vm286, %v245, 0
        %290 = vmatpush.msra.mxu0 0.0
        %291 = vmatpush.msra.mxu0 0.0
        %292 = vmatpush.msra.mxu0 0.0
        %293 = vmatpush.msra.mxu0 0.0
        %294 = vmatpush.msra.mxu0 0.0
        %295 = vmatpush.msra.mxu0 0.0
        %296 = vmatpush.msra.mxu0 0.0
        %297 = vmatpush.msra.mxu0 0.0
        %298 = vmatpush.msra.mxu0 0.0
        %299 = vmatpush.msra.mxu0 0.0
        %300 = vmatpush.msra.mxu0 0.0
        %301 = vmatpush.msra.mxu0 0.0
        %302 = vmatpush.msra.mxu0 0.0
        %303 = vmatpush.msra.mxu0 0.0
        %304 = vmatpush.msra.mxu0 0.0
        %305 = vmatpush.msra.mxu0 %v288
        %306 = vmatmul.f32.gmra.mxu0 %v284
        %v307 = vpop.f32.mrf.mxu0
        %v308 = vadd.f32 0.0, %v307
        %309 = vdwg.mxu0
        %v310 = vmul.f32 %v271, %v271
        %v311 = vsel %vm273, %v310, 0.0
        %312 = vadd.xlane.f32.xlu0 %v311
        %v313 = vpop.xlane.xlu0 %312
        %v314 = vrot.slane %v313, 4
        %v315 = vadd.f32 %v313, %v314
        %v316 = vrot.slane %v315, 2
        %v317 = vadd.f32 %v315, %v316
        %v318 = vrot.slane %v317, 1
        %v319 = vadd.f32 %v317, %v318
        %s320 = vtos %v319
        %v321 = vmul.f32 %v308, 2.0
        %v322 = vsub.f32 %v256, %v321
        %v323 = vstv %s320
        %v324 = vadd.f32 %v322, %v323
        %v325 = vmin.f32 %v269, %v324
        %v326 = vsel %vm280, %v325, -inf
        %327 = vmax.xlane.f32.xlu0 %v326
        %v328 = vpop.xlane.xlu0 %327
        %v329 = vrot.slane %v328, 4
        %v330 = vmax.f32 %v328, %v329
        %v331 = vrot.slane %v330, 2
        %v332 = vmax.f32 %v330, %v331
        %v333 = vrot.slane %v332, 1
        %v334 = vmax.f32 %v332, %v333
        %s335 = vtos %v334
        %v336 = vstv %s335
        %vm337 = vcmp.eq.f32.partialorder %v325, %v336
        %v338 = vsel %vm337, %v247, 16
        %v339 = vsel %vm280, %v338, 2147483647
        %v340 = vand.u32 %v339, 65535
        %v341 = vshra.s32 %v339, 16
        %v342 = vcvt.s32.f32 %v340
        %v343 = vcvt.s32.f32 %v341
        %344 = vmin.xlane.f32.xlu0 %v343
        %v345 = vpop.xlane.xlu0 %344
        %vm346 = vcmp.eq.f32.partialorder %v343, %v345
        %v347 = vsel %vm346, %v342, inf
        %348 = vmin.xlane.f32.xlu0 %v347
        %v349 = vpop.xlane.xlu0 %348
        %v350 = vcvt.f32.s32 %v349
        %v351 = vcvt.f32.s32 %v345
        %v352 = vshll.u32 %v351, 16
        %v353 = vadd.s32 %v352, %v350
        %v354 = vrot.slane %v353, 4
        %vm355 = vcmp.lt.s32.totalorder %v353, %v354
        %v356 = vsel %vm355, %v353, %v354
        %v357 = vrot.slane %v356, 2
        %vm358 = vcmp.lt.s32.totalorder %v356, %v357
        %v359 = vsel %vm358, %v356, %v357
        %v360 = vrot.slane %v359, 1
        %vm361 = vcmp.lt.s32.totalorder %v359, %v360
        %v362 = vsel %vm361, %v359, %v360
        %s363 = vtos %v362
      $region37: #{generate_graph.1} parent=31 // loop_footer
        %s267 = sadd.s32 1, %s263
      $region38: #{generate_graph.1} parent=31 // loop_footer_branch
        %262 = sbr.rel target = $region34
      $region39: #{generate_graph.1} parent=31 // loop_exit
        _
      %v364 = vld [vmem:[%s239] sm:$0xf]
      %v365 = vld [vmem:[#allocation2] sm:$0xf]
      %v366 = vmul.f32 %v364, %v364
      %vm367 = vcmask 19456
      %v368 = vsel %vm367, %v366, 0.0
      %369 = vadd.xlane.f32.xlu0 %v368
      %v370 = vpop.xlane.xlu0 %369
      %vm371 = vcmask 23552
      %v373 = vsel %vm371, %v364, 0
      %vm375 = vcmask 1042432
      %v377 = vsel %vm375, %v245, 0
      %379 = vmatpush.msra.mxu0 0.0
      %380 = vmatpush.msra.mxu0 0.0
      %381 = vmatpush.msra.mxu0 0.0
      %382 = vmatpush.msra.mxu0 0.0
      %383 = vmatpush.msra.mxu0 0.0
      %384 = vmatpush.msra.mxu0 0.0
      %385 = vmatpush.msra.mxu0 0.0
      %386 = vmatpush.msra.mxu0 0.0
      %387 = vmatpush.msra.mxu0 0.0
      %388 = vmatpush.msra.mxu0 0.0
      %389 = vmatpush.msra.mxu0 0.0
      %390 = vmatpush.msra.mxu0 0.0
      %391 = vmatpush.msra.mxu0 0.0
      %392 = vmatpush.msra.mxu0 0.0
      %393 = vmatpush.msra.mxu0 0.0
      %394 = vmatpush.msra.mxu0 %v377
      %395 = vmatmul.f32.gmra.mxu0 %v373
      %v396 = vpop.f32.mrf.mxu0
      %v397 = vadd.f32 0.0, %v396
      %398 = vdwg.mxu0
      %v399 = vmul.f32 %v397, 2.0
      %v400 = vsub.f32 %v256, %v399
      %v401 = vadd.f32 %v400, %v370
      loop: start=0, step=1, limit=4
      $region40: #{generate_graph.1} parent=31 // loop_pre_header
        _
      $region41: #{generate_graph.1} parent=31 // loop_header
        %s403 = sphi 0, %s407
        %p404 = scmp.ge.s32.totalorder %s403, 4
        %v408 = vphi %v401, %v437
      $region42: #{generate_graph.1} parent=31 // loop_header_branch
        %406 = sbr.rel (%p404) target = $region46
      $region43: #{generate_graph.1} parent=31 // loop_body
        %vm409 = vcmask 125952
        %v410 = vsel %vm409, %v408, inf
        %411 = vmin.xlane.f32.xlu0 %v410
        %v412 = vpop.xlane.xlu0 %411
        %vm413 = vcmp.eq.f32.partialorder %v408, %v412
        %v414 = vsel %vm413, %v247, 16
        %v415 = vsel %vm409, %v414, 2147483647
        %v416 = vand.u32 %v415, 65535
        %v417 = vshra.s32 %v415, 16
        %v418 = vcvt.s32.f32 %v416
        %v419 = vcvt.s32.f32 %v417
        %420 = vmin.xlane.f32.xlu0 %v419
        %v421 = vpop.xlane.xlu0 %420
        %vm422 = vcmp.eq.f32.partialorder %v419, %v421
        %v423 = vsel %vm422, %v418, inf
        %424 = vmin.xlane.f32.xlu0 %v423
        %v425 = vpop.xlane.xlu0 %424
        %v426 = vcvt.f32.s32 %v425
        %v427 = vcvt.f32.s32 %v421
        %v428 = vshll.u32 %v427, 16
        %v429 = vadd.s32 %v428, %v426
        %vm430 = vcmp.eq.s32.totalorder %v247, %v429
        %s431 = smul.u32 %s403, 8
        %v432 = vsel %vm430, 1, 0
        %v433 = vcvt.s32.f32 %v432
        %v434 = vsub.f32 %v433, %v365
        %s435 = scalar_lea.vmem [#allocation3], %s431
        %436 = vst.msk [vmem:[%s435] sm:$0xf] %vm409, %v434
        %v437 = vsel %vm430, 3e+38, %v408
      $region44: #{generate_graph.1} parent=31 // loop_footer
        %s407 = sadd.s32 1, %s403
      $region45: #{generate_graph.1} parent=31 // loop_footer_branch
        %402 = sbr.rel target = $region41
      $region46: #{generate_graph.1} parent=31 // loop_exit
        _
      %v438 = vld [vmem:[#allocation3] sm:$0xff]
      %v439 = vld [vmem:[#allocation3 + $0x8] sm:$0xff]
      %v440 = vld [vmem:[#allocation3 + $0x10] sm:$0xff]
      %v441 = vld [vmem:[#allocation3 + $0x18] sm:$0xff]
      %v442 = vpack.c.bf16 %v439, %v438
      %v443 = vpack.c.bf16 %v441, %v440
      %v444 = vld [vmem:[%s235] sm:$0xf]
      %v445 = vld [vmem:[%s235 + $0x4] sm:$0xf]
      %v448 = vunpack.c.l.b16 %v444
      %v449 = vunpack.c.l.b16 %v445
      %v450 = vpack.c.b16 %v449, %v448
      %v453 = vsel %vm257, %v442, 0
      %v456 = vsel %vm257, %v443, 0
      %458 = vmatpush.bf16.msra.mxu0 0
      %459 = vmatpush.bf16.msra.mxu0 0
      %460 = vmatpush.bf16.msra.mxu0 0
      %461 = vmatpush.bf16.msra.mxu0 0
      %462 = vmatpush.bf16.msra.mxu0 0
      %463 = vmatpush.bf16.msra.mxu0 0
      %464 = vmatpush.bf16.msra.mxu0 0
      %465 = vmatpush.bf16.msra.mxu0 %v450
      %466 = vmatmul.bf16.gmra.mxu0 %v453
      %v467 = vpop.f32.mrf.mxu0
      %v468 = vadd.f32 0.0, %v467
      %v469 = vpop.f32.mrf.mxu0
      %v470 = vadd.f32 0.0, %v469
      %471 = vmatmul.bf16.gmra.mxu0 %v456
      %v472 = vpop.f32.mrf.mxu0
      %v473 = vadd.f32 0.0, %v472
      %v474 = vpop.f32.mrf.mxu0
      %v475 = vadd.f32 0.0, %v474
      %476 = vdwg.mxu0
      %vm477 = vcmask 60416
      %478 = vst.msk [vmem:[%s243] sm:$0xf] %vm477, %v468
      %480 = vrot.lane.b32.xlu0 %v470, 8
      %v481 = vpop.permute.xlu0 %480
      %vm483 = vcmask 126016
      %484 = vst.msk [vmem:[%s243] sm:$0xf] %vm483, %v481
      %486 = vrot.lane.b32.xlu0 %v473, 16
      %v487 = vpop.permute.xlu0 %486
      %vm489 = vcmask 191616
      %490 = vst.msk [vmem:[%s243] sm:$0xf] %vm489, %v487
      %492 = vrot.lane.b32.xlu0 %v475, 24
      %v493 = vpop.permute.xlu0 %492
      %vm495 = vcmask 257216
      %496 = vst.msk [vmem:[%s243] sm:$0xf] %vm495, %v493
      %p497 = scmp.lt.s32.totalorder %s16, 1
      %s498 = scalar_select %p497, %s16, 1
      %s499 = smul.addr %s498, 4
      %s500 = scalar_lea.vmem %s3, %s499
      %p501 = scmp.lt.s32.totalorder %s16, 1
      %s502 = scalar_select %p501, %s16, 1
      %s503 = smul.addr %s502, 4
      %s504 = scalar_lea.vmem %s4, %s503
      // Predicated region
      $region47: #{generate_graph.1} parent=31 // pred_check
        %p505 = pneg %p112
      $region48: #{generate_graph.1} parent=31 // pred_check_branch
        %507 = sbr.rel (%p505) target = $region50
      $region49: #{generate_graph.1} parent=31 // pred_region
        _
      $region50: #{generate_graph.1} parent=31 // pred_fallthru
        _
      // Predicated region
      $region51: #{generate_graph.1} parent=31 // pred_check
        %p508 = pneg %p138
      $region52: #{generate_graph.1} parent=31 // pred_check_branch
        %510 = sbr.rel (%p508) target = $region54
      $region53: #{generate_graph.1} parent=31 // pred_region
        _
      $region54: #{generate_graph.1} parent=31 // pred_fallthru
        _
    $region32: #{generate_graph.1} parent=5 // pred_fallthru
      _
    %p511 = scmp.le.s32.totalorder 2, %s11
    // Predicated region
    $region55: #{generate_graph.1} parent=5 // pred_check
      %p512 = pneg %p511
    $region56: #{generate_graph.1} parent=5 // pred_check_branch
      %514 = sbr.rel (%p512) target = $region58
    $region57: #{generate_graph.1} parent=5 // pred_region
      %s515 = ssub.s32 %s11, 2
      // Predicated region
      $region59: #{generate_graph.1} parent=57 // pred_check
        %p516 = pneg %p118
      $region60: #{generate_graph.1} parent=57 // pred_check_branch
        %518 = sbr.rel (%p516) target = $region62
      $region61: #{generate_graph.1} parent=57 // pred_region
        %p519 = scmp.lt.s32.totalorder %s17, 1
        %s520 = scalar_select %p519, %s17, 1
        %s521 = smul.addr %s520, 4
        %s522 = scalar_lea.vmem %s3, %s521
      $region62: #{generate_graph.1} parent=57 // pred_fallthru
        _
      // Predicated region
      $region63: #{generate_graph.1} parent=57 // pred_check
        %p523 = pneg %p144
      $region64: #{generate_graph.1} parent=57 // pred_check_branch
        %525 = sbr.rel (%p523) target = $region66
      $region65: #{generate_graph.1} parent=57 // pred_region
        %p526 = scmp.lt.s32.totalorder %s17, 1
        %s527 = scalar_select %p526, %s17, 1
        %s528 = smul.addr %s527, 4
        %s529 = scalar_lea.vmem %s4, %s528
      $region66: #{generate_graph.1} parent=57 // pred_fallthru
        _
    $region58: #{generate_graph.1} parent=5 // pred_fallthru
      _
  $region6: #{generate_graph.1} parent=0 // loop_footer
    %s15 = sadd.s32 1, %s11
  $region7: #{generate_graph.1} parent=0 // loop_footer_branch
    %10 = sbr.rel target = $region3
  $region8: #{generate_graph.1} parent=0 // loop_exit
    _

</llo_original>
